<compile_context>
chip_gen: v6e
topology: v6e:2x2x1
jax: 0.10.0
libtpu: 0.0.40
codegen_flags: <defaults>
</compile_context>

<pallas_src>
import functools

import jax
import jax.numpy as jnp
from jax import lax
from jax.experimental import pallas as pl
from jax.experimental.pallas import tpu as pltpu


def upconv_kernel(w_ref, b_ref, x_ref, halo_ref, o_ref, *, wp2, negative_slope):
    """One (batch, M-tile) step.

    w_ref:    (4, 4*Cout, Cin) bf16  per-(di,dj) phase weights (resident)
    b_ref:    (4*Cout, 1)      f32   phase-tiled bias (resident)
    x_ref:    (Cin, tile_m)    bf16  flattened padded image, this tile
    halo_ref: (Cin, halo)      bf16  first `halo` elements of the next tile
    o_ref:    (4*Cout, tile_m) f32   phase-major output tile (lane-dense)
    """
    tile_m = o_ref.shape[-1]
    # Shifted views are contiguous in the flattened padded image; the halo
    # block supplies the (W+3)-element lookahead so all slices are static.
    slab = jnp.concatenate([x_ref[...], halo_ref[...]], axis=-1)   # (Cin, tile_m+halo)
    acc = None
    for j, off in enumerate((0, 1, wp2, wp2 + 1)):                 # (di, dj) taps
        view = slab[:, off:off + tile_m]                           # (Cin, tile_m) bf16
        part = jnp.dot(w_ref[j], view, preferred_element_type=jnp.float32)
        acc = part if acc is None else acc + part
    acc = acc + b_ref[...]                                         # (4*Cout, 1) bcast
    if negative_slope == 0.0:
        acc = jnp.maximum(acc, 0.0)                                # ReLU
    else:
        acc = jnp.where(acc >= 0.0, acc, negative_slope * acc)     # LeakyReLU
    o_ref[...] = acc.astype(o_ref.dtype)


def _tpu_info():
    """Generation-aware core count / VMEM request (safe fallback)."""
    try:
        kind = jax.devices()[0].device_kind.lower()
    except Exception:
        kind = ""
    if "v5p" in kind or "v4" in kind:
        return {"num_cores": 2, "vmem_limit": 96 * 2**20}   # 128 MiB physical
    if "v6" in kind or "v5" in kind:                         # v6e / v5e: 1 TC
        return {"num_cores": 1, "vmem_limit": 96 * 2**20}
    # v7x (2 TCs, 64 MiB VMEM per core) and unknown devices: conservative.
    return {"num_cores": 2, "vmem_limit": 48 * 2**20}


def _pick_tile_m(m_img, cin, c4, halo, *, n_batch, num_cores, vmem_budget):
    """Lane-dense M tile: prefer one full-image tile (minimal padding); cap by
    the double-buffered working set; split only if a TensorCore would idle."""
    rup = lambda v, q: pl.cdiv(v, q) * q
    full = rup(m_img, halo)
    per_lane = 2 * (2 * cin + 4 * c4)            # double-buffered bf16 in + f32 out
    cap = max(halo, (vmem_budget // per_lane) // halo * halo)
    tm = min(full, cap)
    if n_batch * pl.cdiv(full, tm) < num_cores and tm > halo:
        tm = max(halo, rup(pl.cdiv(m_img, num_cores), halo))
    return tm


def up_conv(x, weight, bias, *, is_last=False, tile_m=None):
    """Forward of UpConv.

    x:      (N, C_in, H, W)      float32, NCHW (PyTorch convention)
    weight: (C_in, C_out, 4, 4)  PyTorch ConvTranspose2d weight layout
    bias:   (C_out,)
    returns (N, C_out, 2H, 2W)   NCHW
    """
    N, Cin, H, W = x.shape
    Cin_w, Cout, KH, KW = weight.shape
    assert Cin == Cin_w and KH == 4 and KW == 4
    Hp2, Wp2 = H + 2, W + 2
    C4 = 4 * Cout
    M_img = Hp2 * Wp2

    info = _tpu_info()
    halo = pl.cdiv(Wp2 + 2, 128) * 128                   # lookahead needed per tile
    if tile_m is None:
        tile_m = _pick_tile_m(M_img, Cin, C4, halo, n_batch=N,
                              num_cores=info["num_cores"],
                              vmem_budget=info["vmem_limit"] // 3)
    else:
        tile_m = max(halo, pl.cdiv(tile_m, halo) * halo)
    num_m = pl.cdiv(M_img, tile_m)
    M_pad = num_m * tile_m
    M_in = M_pad + halo                                  # room for the last halo block

    # ---- glue: pad + flatten the input once (bf16), no cols materialization ----
    x_flat = jnp.pad(x.astype(jnp.bfloat16), ((0, 0), (0, 0), (1, 1), (1, 1)))
    x_flat = x_flat.reshape(N, Cin, M_img)
    x_flat = jnp.pad(x_flat, ((0, 0), (0, 0), (0, M_in - M_img)))

    # per-(di,dj) phase weights: output phase (ry,rx) at anchor (p,q) uses
    # kernel tap (ky,kx) = (2+ry-2*di, 2+rx-2*dj) on x_pad[p+di, q+dj].
    idx = jnp.array([[2, 0], [3, 1]])                    # idx[r, d] = 2 + r - 2*d
    w_sel = weight[:, :, idx, :]                         # (Cin, Cout, ry, di, kx)
    w_sel = w_sel[:, :, :, :, idx]                       # (Cin, Cout, ry, di, rx, dj)
    w_mat = (w_sel.transpose(3, 5, 2, 4, 1, 0)           # (di, dj, ry, rx, Cout, Cin)
             .reshape(4, C4, Cin).astype(jnp.bfloat16))
    b_mat = jnp.tile(bias, 4).reshape(C4, 1).astype(jnp.float32)

    negative_slope = 0.01 if is_last else 0.0
    kernel = functools.partial(upconv_kernel, wp2=Wp2,
                               negative_slope=negative_slope)

    sq = pl.Squeezed() if hasattr(pl, "Squeezed") else None
    hb = tile_m // halo                                  # halo-blocks per M tile
    if num_m >= 4 and hasattr(pl, "Buffered"):           # many short tiles: deepen pipeline
        x_spec = pl.BlockSpec((sq, Cin, tile_m), lambda n, i: (n, 0, i),
                              pipeline_mode=pl.Buffered(3))
    else:
        x_spec = pl.BlockSpec((sq, Cin, tile_m), lambda n, i: (n, 0, i))

    flops = 2 * N * M_img * (4 * Cin) * C4
    bytes_accessed = x_flat.size * 2 + w_mat.size * 2 + N * C4 * M_pad * 4

    out = pl.pallas_call(
        kernel,
        out_shape=jax.ShapeDtypeStruct((N, C4, M_pad), x.dtype),
        grid_spec=pltpu.PrefetchScalarGridSpec(
            num_scalar_prefetch=0,
            grid=(N, num_m),
            in_specs=[
                pl.BlockSpec((4, C4, Cin), lambda n, i: (0, 0, 0)),   # weights (resident)
                pl.BlockSpec((C4, 1), lambda n, i: (0, 0)),           # bias (resident)
                x_spec,                                               # image tile
                pl.BlockSpec((sq, Cin, halo),                         # next-tile halo
                             lambda n, i: (n, 0, (i + 1) * hb)),
            ],
            out_specs=pl.BlockSpec((sq, C4, tile_m), lambda n, i: (n, 0, i)),
        ),
        compiler_params=pltpu.CompilerParams(
            dimension_semantics=("parallel", "parallel"),
            vmem_limit_bytes=info["vmem_limit"]),
        cost_estimate=pl.CostEstimate(flops=flops, transcendentals=0,
                                      bytes_accessed=bytes_accessed),
    )(w_mat, b_mat, x_flat, x_flat)

    # ---- glue: crop (before the transpose), pixel-shuffle back to NCHW ----
    # TODO(synk): this final reshape/transpose is an extra HBM round trip kept
    # only to match the PyTorch NCHW output; a fused consumer could take the
    # phase-major (4*Cout, M) layout directly.
    out = out[:, :, :M_img].reshape(N, 2, 2, Cout, Hp2, Wp2)   # (n, ry, rx, co, p, q)
    out = out.transpose(0, 3, 4, 1, 5, 2).reshape(N, Cout, 2 * Hp2, 2 * Wp2)
    return out[:, :, 1:2 * H + 1, 1:2 * W + 1]


def up_conv_reference(x, weight, bias, *, is_last=False):
    # Pure-XLA f32 reference: conv_transpose == conv_general_dilated with
    # lhs_dilation=2, padding=2, spatially flipped / transposed kernel.
    w_conv = jnp.flip(weight, axis=(2, 3)).transpose(1, 0, 2, 3)  # (Cout, Cin, 4, 4)
    y = lax.conv_general_dilated(
        x, w_conv, window_strides=(1, 1), padding=((2, 2), (2, 2)),
        lhs_dilation=(2, 2), dimension_numbers=("NCHW", "OIHW", "NCHW"))
    y = y + bias.reshape(1, -1, 1, 1)
    slope = 0.01 if is_last else 0.0
    return jnp.where(y >= 0.0, y, slope * y)


if __name__ == "__main__":
    # Small shapes consistent with the module: batch=2, in_c=4, out_c=8, 16x16.
    N, Cin, Cout, H, W = 2, 4, 8, 16, 16

    key = jax.random.PRNGKey(0)
    kx_, kw_, kb_ = jax.random.split(key, 3)
    x = jax.random.normal(kx_, (N, Cin, H, W), dtype=jnp.float32)
    weight = 0.1 * jax.random.normal(kw_, (Cin, Cout, 4, 4), dtype=jnp.float32)
    bias = 0.1 * jax.random.normal(kb_, (Cout,), dtype=jnp.float32)

    for is_last in (False, True):   # ReLU path and LeakyReLU path
        out = jax.block_until_ready(up_conv(x, weight, bias, is_last=is_last))
        assert out.shape == (N, Cout, 2 * H, 2 * W), out.shape
        ref = jax.block_until_ready(
            up_conv_reference(x, weight, bias, is_last=is_last))
        # bf16 MXU operands -> tolerance loosened vs the f32 XLA reference
        if not jnp.allclose(out, ref, atol=3e-2, rtol=3e-2):
            err = float(jnp.max(jnp.abs(out - ref)))
            raise AssertionError(f"Pallas UpConv mismatch (max abs err {err})")

    print("KERNEL_OK")
</pallas_src>

<mosaic_0001>
module attributes {stable_mosaic.version = 11 : i64} {
  func.func @upconv_kernel(%arg0: i32, %arg1: i32, %arg2: memref<4x32x4xbf16, #tpu.memory_space<vmem>>, %arg3: memref<32x1xf32, #tpu.memory_space<vmem>>, %arg4: memref<1x4x384xbf16, #tpu.memory_space<vmem>>, %arg5: memref<1x4x128xbf16, #tpu.memory_space<vmem>>, %arg6: memref<1x32x384xf32, #tpu.memory_space<vmem>>) attributes {dimension_semantics = [#tpu.dimension_semantics<parallel>, #tpu.dimension_semantics<parallel>], iteration_bounds = array<i64: 2, 1>, scalar_prefetch = 0 : i64, scratch_operands = 0 : i64, tpu.core_type = #tpu.core_type<tc>, window_params = [{pipeline_mode = #tpu.pipeline_mode<synchronous>, transform_indices = @transform_0, window_bounds = array<i64: 4, 32, 4>}, {pipeline_mode = #tpu.pipeline_mode<synchronous>, transform_indices = @transform_1, window_bounds = array<i64: 32, 1>}, {transform_indices = @transform_2, window_bounds = array<i64: 1, 4, 384>}, {transform_indices = @transform_3, window_bounds = array<i64: 1, 4, 128>}, {transform_indices = @transform_4, window_bounds = array<i64: 1, 32, 384>}]} {
    %c0 = arith.constant 0 : index
    %c0_0 = arith.constant 0 : index
    %c0_1 = arith.constant 0 : index
    %0 = vector.load %arg4[%c0, %c0_0, %c0_1] : memref<1x4x384xbf16, #tpu.memory_space<vmem>>, vector<1x4x384xbf16>
    %1 = vector.shape_cast %0 : vector<1x4x384xbf16> to vector<4x384xbf16>
    %c0_2 = arith.constant 0 : index
    %c0_3 = arith.constant 0 : index
    %c0_4 = arith.constant 0 : index
    %2 = vector.load %arg5[%c0_2, %c0_3, %c0_4] : memref<1x4x128xbf16, #tpu.memory_space<vmem>>, vector<1x4x128xbf16>
    %3 = vector.shape_cast %2 : vector<1x4x128xbf16> to vector<4x128xbf16>
    %4 = tpu.concatenate %1, %3 in 1 : vector<4x384xbf16>, vector<4x128xbf16> -> vector<4x512xbf16>
    %5 = vector.extract_strided_slice %4 {offsets = [0, 0], sizes = [4, 384], strides = [1, 1]} : vector<4x512xbf16> to vector<4x384xbf16>
    %c0_5 = arith.constant 0 : index
    %c0_6 = arith.constant 0 : index
    %c0_7 = arith.constant 0 : index
    %6 = vector.load %arg2[%c0_5, %c0_6, %c0_7] : memref<4x32x4xbf16, #tpu.memory_space<vmem>>, vector<1x32x4xbf16>
    %7 = vector.shape_cast %6 : vector<1x32x4xbf16> to vector<32x4xbf16>
    %cst = arith.constant dense<0.000000e+00> : vector<32x384xf32>
    %8 = tpu.matmul %7, %5, %cst {dimension_numbers = #tpu.dot_dimension_numbers<[1], [0], [0], [1], [0, 0, 1, 1], [], []>} : vector<32x4xbf16>, vector<4x384xbf16>, vector<32x384xf32> -> vector<32x384xf32>
    %9 = vector.extract_strided_slice %4 {offsets = [0, 1], sizes = [4, 384], strides = [1, 1]} : vector<4x512xbf16> to vector<4x384xbf16>
    %c1 = arith.constant 1 : index
    %c0_8 = arith.constant 0 : index
    %c0_9 = arith.constant 0 : index
    %10 = vector.load %arg2[%c1, %c0_8, %c0_9] : memref<4x32x4xbf16, #tpu.memory_space<vmem>>, vector<1x32x4xbf16>
    %11 = vector.shape_cast %10 : vector<1x32x4xbf16> to vector<32x4xbf16>
    %cst_10 = arith.constant dense<0.000000e+00> : vector<32x384xf32>
    %12 = tpu.matmul %11, %9, %cst_10 {dimension_numbers = #tpu.dot_dimension_numbers<[1], [0], [0], [1], [0, 0, 1, 1], [], []>} : vector<32x4xbf16>, vector<4x384xbf16>, vector<32x384xf32> -> vector<32x384xf32>
    %13 = arith.addf %8, %12 : vector<32x384xf32>
    %14 = vector.extract_strided_slice %4 {offsets = [0, 18], sizes = [4, 384], strides = [1, 1]} : vector<4x512xbf16> to vector<4x384xbf16>
    %c2 = arith.constant 2 : index
    %c0_11 = arith.constant 0 : index
    %c0_12 = arith.constant 0 : index
    %15 = vector.load %arg2[%c2, %c0_11, %c0_12] : memref<4x32x4xbf16, #tpu.memory_space<vmem>>, vector<1x32x4xbf16>
    %16 = vector.shape_cast %15 : vector<1x32x4xbf16> to vector<32x4xbf16>
    %cst_13 = arith.constant dense<0.000000e+00> : vector<32x384xf32>
    %17 = tpu.matmul %16, %14, %cst_13 {dimension_numbers = #tpu.dot_dimension_numbers<[1], [0], [0], [1], [0, 0, 1, 1], [], []>} : vector<32x4xbf16>, vector<4x384xbf16>, vector<32x384xf32> -> vector<32x384xf32>
    %18 = arith.addf %13, %17 : vector<32x384xf32>
    %19 = vector.extract_strided_slice %4 {offsets = [0, 19], sizes = [4, 384], strides = [1, 1]} : vector<4x512xbf16> to vector<4x384xbf16>
    %c3 = arith.constant 3 : index
    %c0_14 = arith.constant 0 : index
    %c0_15 = arith.constant 0 : index
    %20 = vector.load %arg2[%c3, %c0_14, %c0_15] : memref<4x32x4xbf16, #tpu.memory_space<vmem>>, vector<1x32x4xbf16>
    %21 = vector.shape_cast %20 : vector<1x32x4xbf16> to vector<32x4xbf16>
    %cst_16 = arith.constant dense<0.000000e+00> : vector<32x384xf32>
    %22 = tpu.matmul %21, %19, %cst_16 {dimension_numbers = #tpu.dot_dimension_numbers<[1], [0], [0], [1], [0, 0, 1, 1], [], []>} : vector<32x4xbf16>, vector<4x384xbf16>, vector<32x384xf32> -> vector<32x384xf32>
    %23 = arith.addf %18, %22 : vector<32x384xf32>
    %c0_17 = arith.constant 0 : index
    %c0_18 = arith.constant 0 : index
    %24 = vector.load %arg3[%c0_17, %c0_18] : memref<32x1xf32, #tpu.memory_space<vmem>>, vector<32x1xf32>
    %25 = vector.broadcast %24 : vector<32x1xf32> to vector<32x384xf32>
    %26 = arith.addf %23, %25 : vector<32x384xf32>
    %cst_19 = arith.constant 0.000000e+00 : f32
    %27 = vector.broadcast %cst_19 : f32 to vector<32x384xf32>
    %28 = arith.maximumf %26, %27 : vector<32x384xf32>
    %c0_20 = arith.constant 0 : index
    %c0_21 = arith.constant 0 : index
    %c0_22 = arith.constant 0 : index
    %29 = vector.load %arg6[%c0_20, %c0_21, %c0_22] : memref<1x32x384xf32, #tpu.memory_space<vmem>>, vector<1x32x384xf32>
    %30 = vector.shape_cast %29 : vector<1x32x384xf32> to vector<32x384xf32>
    %31 = vector.shape_cast %28 : vector<32x384xf32> to vector<1x32x384xf32>
    tpu.vector_store %arg6[%c0_20, %c0_21, %c0_22], %31 {strides = array<i32>} : memref<1x32x384xf32, #tpu.memory_space<vmem>>, vector<1x32x384xf32>,
    return
  }
  func.func @transform_0(%arg0: i32, %arg1: i32) -> (i32, i32, i32) {
    %c0_i32 = arith.constant 0 : i32
    %c0_i32_0 = arith.constant 0 : i32
    %c0_i32_1 = arith.constant 0 : i32
    %c0_i32_2 = arith.constant 0 : i32
    return %c0_i32, %c0_i32_0, %c0_i32_1 : i32, i32, i32
  }
  func.func @transform_1(%arg0: i32, %arg1: i32) -> (i32, i32) {
    %c0_i32 = arith.constant 0 : i32
    %c0_i32_0 = arith.constant 0 : i32
    %c0_i32_1 = arith.constant 0 : i32
    return %c0_i32, %c0_i32_0 : i32, i32
  }
  func.func @transform_2(%arg0: i32, %arg1: i32) -> (i32, i32, i32) {
    %c0_i32 = arith.constant 0 : i32
    %c0_i32_0 = arith.constant 0 : i32
    return %arg0, %c0_i32, %arg1 : i32, i32, i32
  }
  func.func @transform_3(%arg0: i32, %arg1: i32) -> (i32, i32, i32) {
    %c1_i32 = arith.constant 1 : i32
    %0 = arith.addi %arg1, %c1_i32 : i32
    %c3_i32 = arith.constant 3 : i32
    %1 = arith.muli %0, %c3_i32 : i32
    %c0_i32 = arith.constant 0 : i32
    %c0_i32_0 = arith.constant 0 : i32
    return %arg0, %c0_i32, %1 : i32, i32, i32
  }
  func.func @transform_4(%arg0: i32, %arg1: i32) -> (i32, i32, i32) {
    %c0_i32 = arith.constant 0 : i32
    %c0_i32_0 = arith.constant 0 : i32
    return %arg0, %c0_i32, %arg1 : i32, i32, i32
  }
}

</mosaic_0001>

<llo_original>
// kernel: tpu_custom_call.1
$region0: #{tpu_custom_call.1}
  #allocation0 [shape = 'u32[]', space=smem, size = 0x4, offset = 0x4, fixed_abs, tag = 'smem constant byte address 0x4 - core index']
  #allocation1 [shape = 'u32[144,128]{1,0:T(1,128)}', space=vmem, size = 0x12000, scoped, tag = 'internal scratch']
  %s0 = inlined_call_operand.vmem [shape: bf16[4,32,4], index: 0, kind: input, shape index: {}]
  %s1 = inlined_call_operand.vmem [shape: f32[32,1], index: 1, kind: input, shape index: {}]
  %s2 = inlined_call_operand.vmem [shape: bf16[2,4,512], index: 2, kind: input, shape index: {}]
  %s3 = inlined_call_operand.vmem [shape: bf16[2,4,512], index: 3, kind: input, shape index: {}]
  %s4 = inlined_call_operand.hbm [shape: f32[2,32,384], index: 4, kind: output, shape index: {}]
  %s5 = sld [smem:[#allocation0]]
  $region49: #{tpu_custom_call.1} parent=0
    _
  %s7 = ssub.s32 1, %s5
  %s8 = scalar_select 0, %s7, %s5
  $region1: #{tpu_custom_call.1} parent=0
    #allocation2 [shape = 'u8[98304]{0}', space=vmem, size = 0x18000, scoped, tag = 'output window, operand 0']
    #allocation3 [shape = 's32[2]{0}', space=sflag, size = 0x8, scoped, tag = 'scoped memory for tpu_custom_call.1']
    %9 = vsyncpa [#allocation3], 0
    %s10 = scalar_lea.sflag [#allocation3], 1
    %11 = vsyncpa %s10, 0
    loop: start=0, step=1, limit=4
    $region2: #{tpu_custom_call.1} parent=1 // loop_pre_header
      _
    $region3: #{tpu_custom_call.1} parent=1 // loop_header
      %s13 = sphi 0, %s17
      %p14 = scmp.ge.s32.totalorder %s13, 4
      %s20 = sphi 0, %s32
      %s21 = sphi 0, %s28
      %s22 = sphi 0, %s20
      %s23 = sphi 0, %s21
      %s24 = sphi 0, %s22
      %s25 = sphi 0, %s23
      %s33 = sphi 0, %s33
      %s35 = sphi 0, %s33
      %s36 = sphi 0, %s35
      %s50 = sphi 0, %s36
      %s54 = sphi 0, %s54
      %s56 = sphi 0, %s54
      %s57 = sphi 0, %s56
      %s71 = sphi 0, %s57
      %s79 = sphi 0, %s81
      %s82 = sphi 0, %s79
      %s83 = sphi 0, %s82
      %s99 = sphi 0, %s83
      %s111 = sphi 0, %s113
      %s114 = sphi 0, %s111
      %s115 = sphi 0, %s114
      %s131 = sphi 0, %s115
      %s139 = sphi 0, %s141
      %s142 = sphi 0, %s139
      %s143 = sphi 0, %s142
      %s159 = sphi 0, %s143
    $region4: #{tpu_custom_call.1} parent=1 // loop_header_branch
      %16 = sbr.rel (%p14) target = $region8
    $region5: #{tpu_custom_call.1} parent=1 // loop_body
      %s18 = ssub.s32 %s13, 1
      %s19 = ssub.s32 %s13, 2
      %s26 = sadd.s32 1, %s21
      %p27 = scmp.ge.s32.totalorder %s26, 1
      %s28 = scalar_select %p27, 0, %s26
      %s29 = sadd.s32 1, %s20
      %s30 = scalar_select %p27, %s29, %s20
      %p31 = scmp.ge.s32.totalorder %s30, 2
      %s32 = scalar_select %p31, 0, %s30
      %s34 = sadd.s32 %s33, 1
      %p37 = scmp.eq.s32.totalorder %s13, 1
      %p38 = scmp.ne.s32.totalorder %s33, %s35
      %p39 = scmp.eq.s32.totalorder %s13, 0
      %p40 = por %p38, %p39
      %p41 = scmp.ne.s32.totalorder %s33, %s35
      %p42 = scmp.eq.s32.totalorder %s18, 1
      %p43 = por %p41, %p42
      %p44 = scmp.ne.s32.totalorder %s35, %s36
      %p45 = scmp.eq.s32.totalorder %s18, 0
      %p46 = por %p44, %p45
      %p47 = scmp.ne.s32.totalorder %s35, %s36
      %p48 = scmp.eq.s32.totalorder %s19, 1
      %p49 = por %p47, %p48
      %p51 = scmp.ne.s32.totalorder %s36, %s50
      %p52 = scmp.eq.s32.totalorder %s19, 0
      %p53 = por %p51, %p52
      %s55 = sadd.s32 %s54, 1
      %p58 = scmp.eq.s32.totalorder %s13, 1
      %p59 = scmp.ne.s32.totalorder %s54, %s56
      %p60 = scmp.eq.s32.totalorder %s13, 0
      %p61 = por %p59, %p60
      %p62 = scmp.ne.s32.totalorder %s54, %s56
      %p63 = scmp.eq.s32.totalorder %s18, 1
      %p64 = por %p62, %p63
      %p65 = scmp.ne.s32.totalorder %s56, %s57
      %p66 = scmp.eq.s32.totalorder %s18, 0
      %p67 = por %p65, %p66
      %p68 = scmp.ne.s32.totalorder %s56, %s57
      %p69 = scmp.eq.s32.totalorder %s19, 1
      %p70 = por %p68, %p69
      %p72 = scmp.ne.s32.totalorder %s57, %s71
      %p73 = scmp.eq.s32.totalorder %s19, 0
      %p74 = por %p72, %p73
      %s75 = ssub.s32 %s20, %s32
      %s76 = ssub.s32 %s21, %s28
      %s77 = sor.u32 %s75, %s76
      %p78 = scmp.eq.s32.totalorder %s77, 0
      %s80 = sadd.s32 %s79, 1
      %s81 = scalar_select %p78, %s79, %s80
      %p84 = pneg %p78
      %p85 = scmp.eq.s32.totalorder %s13, 1
      %p86 = por %p84, %p85
      %p87 = scmp.ne.s32.totalorder %s79, %s82
      %p88 = scmp.eq.s32.totalorder %s13, 0
      %p89 = por %p87, %p88
      %p90 = scmp.ne.s32.totalorder %s79, %s82
      %p91 = scmp.eq.s32.totalorder %s18, 1
      %p92 = por %p90, %p91
      %p93 = scmp.ne.s32.totalorder %s82, %s83
      %p94 = scmp.eq.s32.totalorder %s18, 0
      %p95 = por %p93, %p94
      %p96 = scmp.ne.s32.totalorder %s82, %s83
      %p97 = scmp.eq.s32.totalorder %s19, 1
      %p98 = por %p96, %p97
      %p100 = scmp.ne.s32.totalorder %s83, %s99
      %p101 = scmp.eq.s32.totalorder %s19, 0
      %p102 = por %p100, %p101
      %s103 = sadd.s32 %s21, 1
      %s104 = smul.u32 %s103, 3
      %s105 = sadd.s32 %s28, 1
      %s106 = smul.u32 %s105, 3
      %s107 = ssub.s32 %s20, %s32
      %s108 = ssub.s32 %s104, %s106
      %s109 = sor.u32 %s107, %s108
      %p110 = scmp.eq.s32.totalorder %s109, 0
      %s112 = sadd.s32 %s111, 1
      %s113 = scalar_select %p110, %s111, %s112
      %p116 = pneg %p110
      %p117 = scmp.eq.s32.totalorder %s13, 1
      %p118 = por %p116, %p117
      %p119 = scmp.ne.s32.totalorder %s111, %s114
      %p120 = scmp.eq.s32.totalorder %s13, 0
      %p121 = por %p119, %p120
      %p122 = scmp.ne.s32.totalorder %s111, %s114
      %p123 = scmp.eq.s32.totalorder %s18, 1
      %p124 = por %p122, %p123
      %p125 = scmp.ne.s32.totalorder %s114, %s115
      %p126 = scmp.eq.s32.totalorder %s18, 0
      %p127 = por %p125, %p126
      %p128 = scmp.ne.s32.totalorder %s114, %s115
      %p129 = scmp.eq.s32.totalorder %s19, 1
      %p130 = por %p128, %p129
      %p132 = scmp.ne.s32.totalorder %s115, %s131
      %p133 = scmp.eq.s32.totalorder %s19, 0
      %p134 = por %p132, %p133
      %s135 = ssub.s32 %s20, %s32
      %s136 = ssub.s32 %s21, %s28
      %s137 = sor.u32 %s135, %s136
      %p138 = scmp.eq.s32.totalorder %s137, 0
      %s140 = sadd.s32 %s139, 1
      %s141 = scalar_select %p138, %s139, %s140
      %p144 = pneg %p138
      %p145 = scmp.eq.s32.totalorder %s13, 1
      %p146 = por %p144, %p145
      %p147 = scmp.ne.s32.totalorder %s139, %s142
      %p148 = scmp.eq.s32.totalorder %s13, 0
      %p149 = por %p147, %p148
      %p150 = scmp.ne.s32.totalorder %s139, %s142
      %p151 = scmp.eq.s32.totalorder %s18, 1
      %p152 = por %p150, %p151
      %p153 = scmp.ne.s32.totalorder %s142, %s143
      %p154 = scmp.eq.s32.totalorder %s18, 0
      %p155 = por %p153, %p154
      %p156 = scmp.ne.s32.totalorder %s142, %s143
      %p157 = scmp.eq.s32.totalorder %s19, 1
      %p158 = por %p156, %p157
      %p160 = scmp.ne.s32.totalorder %s143, %s159
      %p161 = scmp.eq.s32.totalorder %s19, 0
      %p162 = por %p160, %p161
      %p163 = scmp.le.s32.totalorder 1, %s13
      %p164 = scmp.lt.s32.totalorder %s13, 3
      %p165 = pnand %p163, %p164
      %p166 = pneg %p165
      // Predicated region
      $region9: #{tpu_custom_call.1} parent=5 // pred_check
        _
      $region10: #{tpu_custom_call.1} parent=5 // pred_check_branch
        %168 = sbr.rel (%p165) target = $region12
      $region11: #{tpu_custom_call.1} parent=5 // pred_region
        %s169 = ssub.s32 %s13, 1
        // Predicated region
        $region13: #{tpu_custom_call.1} parent=11 // pred_check
          %p170 = pneg %p46
        $region14: #{tpu_custom_call.1} parent=11 // pred_check_branch
          %172 = sbr.rel (%p170) target = $region16
        $region15: #{tpu_custom_call.1} parent=11 // pred_region
          _
        $region16: #{tpu_custom_call.1} parent=11 // pred_fallthru
          _
        // Predicated region
        $region17: #{tpu_custom_call.1} parent=11 // pred_check
          %p173 = pneg %p67
        $region18: #{tpu_custom_call.1} parent=11 // pred_check_branch
          %175 = sbr.rel (%p173) target = $region20
        $region19: #{tpu_custom_call.1} parent=11 // pred_region
          _
        $region20: #{tpu_custom_call.1} parent=11 // pred_fallthru
          _
      $region12: #{tpu_custom_call.1} parent=5 // pred_fallthru
        _
      %p176 = scmp.lt.s32.totalorder %s13, 2
      // Predicated region
      $region21: #{tpu_custom_call.1} parent=5 // pred_check
        %p177 = pneg %p176
      $region22: #{tpu_custom_call.1} parent=5 // pred_check_branch
        %179 = sbr.rel (%p177) target = $region24
      $region23: #{tpu_custom_call.1} parent=5 // pred_region
        // Predicated region
        $region25: #{tpu_custom_call.1} parent=23 // pred_check
          %p180 = pneg %p89
        $region26: #{tpu_custom_call.1} parent=23 // pred_check_branch
          %182 = sbr.rel (%p180) target = $region28
        $region27: #{tpu_custom_call.1} parent=23 // pred_region
          %s183 = smul.u32 3, %s21
          %s184 = ssub.s32 4, %s183
          %p185 = scmp.lt.s32.totalorder %s184, 3
          %s186 = scalar_select %p185, %s184, 3
          %s187 = smul.u32 32, %s186
          %p188 = scmp.lt.s32.totalorder %s20, 1
          %s189 = scalar_select %p188, %s20, 1
          %p190 = scmp.lt.s32.totalorder %s183, 3
          %s191 = scalar_select %p190, %s183, 3
          %s192 = smul.addr %s189, 4
          %s193 = sadd.s32 %s191, %s192
          %s194 = smul.addr %s193, 2
          %s195 = scalar_lea.vmem %s2, %s194
          %s196 = smul.u32 3, %s21
          %s197 = ssub.s32 4, %s196
          %p198 = scmp.lt.s32.totalorder %s197, 3
          %s199 = scalar_select %p198, %s197, 3
          %s200 = smul.u32 32, %s199
        $region28: #{tpu_custom_call.1} parent=23 // pred_fallthru
          _
        // Predicated region
        $region29: #{tpu_custom_call.1} parent=23 // pred_check
          %p201 = pneg %p121
        $region30: #{tpu_custom_call.1} parent=23 // pred_check_branch
          %203 = sbr.rel (%p201) target = $region32
        $region31: #{tpu_custom_call.1} parent=23 // pred_region
          %s204 = sadd.s32 %s21, 1
          %s205 = smul.u32 %s204, 3
          %p206 = scmp.lt.s32.totalorder %s20, 1
          %s207 = scalar_select %p206, %s20, 1
          %p208 = scmp.lt.s32.totalorder %s205, 3
          %s209 = scalar_select %p208, %s205, 3
          %s210 = smul.addr %s207, 4
          %s211 = sadd.s32 %s209, %s210
          %s212 = smul.addr %s211, 2
          %s213 = scalar_lea.vmem %s3, %s212
          %s214 = sadd.s32 %s21, 1
          %s215 = smul.u32 %s214, 3
        $region32: #{tpu_custom_call.1} parent=23 // pred_fallthru
          _
      $region24: #{tpu_custom_call.1} parent=5 // pred_fallthru
        _
      %p216 = scmp.le.s32.totalorder 1, %s13
      %p217 = scmp.lt.s32.totalorder %s13, 3
      %p218 = pnand %p216, %p217
      %p219 = pneg %p218
      // Predicated region
      $region33: #{tpu_custom_call.1} parent=5 // pred_check
        _
      $region34: #{tpu_custom_call.1} parent=5 // pred_check_branch
        %221 = sbr.rel (%p218) target = $region36
      $region35: #{tpu_custom_call.1} parent=5 // pred_region
        %s222 = ssub.s32 %s13, 1
        %p223 = pneg %p46
        %p224 = pneg %p43
        %p225 = pneg %p67
        %p226 = pneg %p64
        %s227 = smul.u32 3, %s23
        %s228 = ssub.s32 4, %s227
        %p229 = scmp.lt.s32.totalorder %s228, 3
        %s230 = scalar_select %p229, %s228, 3
        %s231 = smul.u32 32, %s230
        %p232 = scmp.lt.s32.totalorder %s22, 1
        %s233 = scalar_select %p232, %s22, 1
        %p234 = scmp.lt.s32.totalorder %s227, 3
        %s235 = scalar_select %p234, %s227, 3
        %s236 = smul.addr %s233, 4
        %s237 = sadd.s32 %s235, %s236
        %s238 = smul.addr %s237, 2
        %s239 = scalar_lea.vmem %s2, %s238
        %p240 = pneg %p95
        %p241 = pneg %p92
        %s242 = sadd.s32 %s23, 1
        %s243 = smul.u32 %s242, 3
        %p244 = scmp.lt.s32.totalorder %s22, 1
        %s245 = scalar_select %p244, %s22, 1
        %p246 = scmp.lt.s32.totalorder %s243, 3
        %s247 = scalar_select %p246, %s243, 3
        %s248 = smul.addr %s245, 4
        %s249 = sadd.s32 %s247, %s248
        %s250 = smul.addr %s249, 2
        %s251 = scalar_lea.vmem %s3, %s250
        %p252 = pneg %p127
        %p253 = pneg %p124
        %p254 = pneg %p155
        %p255 = pneg %p152
        %s256 = sand.u32 %s142, 1
        %s257 = scalar_lea.sflag [#allocation3], %s256
        %s258 = sand.u32 %s142, 1
        %s259 = smul.addr %s258, 96
        %s260 = scalar_lea.vmem [#allocation2], %s259
        %s261 = smul.u32 3, %s23
        %s262 = ssub.s32 4, %s261
        %p263 = scmp.lt.s32.totalorder %s262, 3
        %s264 = scalar_select %p263, %s262, 3
        %s265 = smul.u32 32, %s264
        %p266 = scmp.lt.s32.totalorder %s22, 1
        %s267 = scalar_select %p266, %s22, 1
        %p268 = scmp.lt.s32.totalorder %s261, 3
        %s269 = scalar_select %p268, %s261, 3
        %s270 = smul.addr %s267, 4
        %s271 = sadd.s32 %s269, %s270
        %s272 = smul.addr %s271, 2
        %s273 = scalar_lea.vmem %s2, %s272
        %s274 = smul.u32 3, %s23
        %s275 = ssub.s32 4, %s274
        %p276 = scmp.lt.s32.totalorder %s275, 3
        %s277 = scalar_select %p276, %s275, 3
        %s278 = smul.u32 32, %s277
        %s279 = sadd.s32 %s23, 1
        %s280 = smul.u32 %s279, 3
        %p281 = scmp.lt.s32.totalorder %s22, 1
        %s282 = scalar_select %p281, %s22, 1
        %p283 = scmp.lt.s32.totalorder %s280, 3
        %s284 = scalar_select %p283, %s280, 3
        %s285 = smul.addr %s282, 4
        %s286 = sadd.s32 %s284, %s285
        %s287 = smul.addr %s286, 2
        %s288 = scalar_lea.vmem %s3, %s287
        %s289 = sadd.s32 %s23, 1
        %s290 = smul.u32 %s289, 3
        %s291 = smul.u32 3, %s23
        %v293 = vld [vmem:[%s273] sm:$0x3f]
        %v294 = vld [vmem:[%s288] sm:$0x3]
        %v296 = vcombine.high %v293, %v293
        %v298 = vunpack.c.l.s4 1983009808
        %v299 = vunpack.c.0.s8 %v298
        %v300 = vlaneseq
        %v301 = vshrl.u32 %v300, 7
        %v302 = vsub.s32 %v299, %v301
        %v303 = vrot.slane %v293, %v302
        %v305 = vunpack.c.l.s4 1983009808
        %v306 = vunpack.c.0.s8 %v305
        %v307 = vlaneseq
        %v308 = vshrl.u32 %v307, 7
        %v309 = vsub.s32 %v306, %v308
        %v310 = vrot.slane %v296, %v309
        %v311 = vcombine.high %v303, %v303
        %v312 = vld [vmem:[%s0] sm:$0xf]
        %v313 = vld [vmem:[%s0 + $0x4] sm:$0xf]
        %v314 = vld [vmem:[%s0 + $0x8] sm:$0xf]
        %v315 = vld [vmem:[%s0 + $0xc] sm:$0xf]
        %s316 = scalar_lea.vmem %s0, 16
        %v317 = vld [vmem:[%s316] sm:$0xf]
        %v318 = vld [vmem:[%s316 + $0x4] sm:$0xf]
        %v319 = vld [vmem:[%s316 + $0x8] sm:$0xf]
        %v320 = vld [vmem:[%s316 + $0xc] sm:$0xf]
        %v325 = vunpack.c.l.b16 %v317
        %v326 = vunpack.c.l.b16 %v318
        %v327 = vunpack.c.l.b16 %v319
        %v328 = vunpack.c.l.b16 %v320
        %v329 = vpack.c.b16 %v326, %v325
        %v330 = vpack.c.b16 %v328, %v327
        %332 = vrot.lane.b32.xlu0 %v303, 127
        %v333 = vpop.permute.xlu0 %332
        %334 = vrot.lane.b32.xlu0 %v311, 127
        %v335 = vpop.permute.xlu0 %334
        %336 = vrot.lane.b32.xlu0 %v310, 127
        %v337 = vpop.permute.xlu0 %336
        %338 = vrot.lane.b32.xlu0 %v294, 127
        %v339 = vpop.permute.xlu0 %338
        %vm340 = vcmask 1039360
        %v341 = vsel %vm340, %v333, %v335
        %v342 = vsel %vm340, %v335, %v337
        %v343 = vsel %vm340, %v337, %v339
        %vm344 = vcmask 31744
        %v346 = vsel %vm344, %v329, 0
        %v349 = vsel %vm344, %v330, 0
        %vm351 = vcmask 1041408
        %v353 = vsel %vm351, %v341, 0
        %v356 = vsel %vm351, %v342, 0
        %v359 = vsel %vm351, %v343, 0
        %361 = vmatprep.subr.bf16.mxu0 0
        %362 = vmatpush1.bf16.msra.mxu0 0
        %363 = vmatprep.subr.bf16.mxu0 0
        %364 = vmatpush1.bf16.msra.mxu0 0
        %365 = vmatprep.subr.bf16.mxu0 0
        %366 = vmatpush1.bf16.msra.mxu0 0
        %367 = vmatprep.subr.bf16.mxu0 0
        %368 = vmatpush1.bf16.msra.mxu0 0
        %369 = vmatprep.subr.bf16.mxu0 0
        %370 = vmatpush1.bf16.msra.mxu0 0
        %371 = vmatprep.subr.bf16.mxu0 0
        %372 = vmatpush1.bf16.msra.mxu0 0
        %373 = vmatprep.subr.bf16.mxu0 0
        %374 = vmatpush1.bf16.msra.mxu0 0
        %375 = vmatprep.subr.bf16.mxu0 %v356
        %376 = vmatpush1.bf16.msra.mxu0 %v353
        %377 = vmatprep.subr.bf16.mxu0 0
        %378 = vmatpush2.bf16.msra.mxu0 0
        %379 = vmatprep.subr.bf16.mxu0 0
        %380 = vmatpush2.bf16.msra.mxu0 0
        %381 = vmatprep.subr.bf16.mxu0 0
        %382 = vmatpush2.bf16.msra.mxu0 0
        %383 = vmatprep.subr.bf16.mxu0 0
        %384 = vmatpush2.bf16.msra.mxu0 0
        %385 = vmatprep.subr.bf16.mxu0 0
        %386 = vmatpush2.bf16.msra.mxu0 0
        %387 = vmatprep.subr.bf16.mxu0 0
        %388 = vmatpush2.bf16.msra.mxu0 0
        %389 = vmatprep.subr.bf16.mxu0 0
        %390 = vmatpush2.bf16.msra.mxu0 0
        %391 = vmatprep.subr.bf16.mxu0 0
        %392 = vmatpush2.bf16.msra.mxu0 0
        %393 = vmatprep.mubr.bf16.mxu0 0
        %394 = vmatmul.mubr.bf16.gmra.mxu0 %v346
        %v395 = vpop.f32.mrf.mxu0
        %v396 = vadd.f32 0.0, %v395
        %v397 = vpop.f32.mrf.mxu0
        %v398 = vadd.f32 0.0, %v397
        %v399 = vpop.f32.mrf.mxu0
        %v400 = vadd.f32 0.0, %v399
        %v401 = vpop.f32.mrf.mxu0
        %v402 = vadd.f32 0.0, %v401
        %403 = vmatprep.mubr.bf16.mxu0 0
        %404 = vmatmul.mubr.bf16.gmra.mxu0 %v349
        %v405 = vpop.f32.mrf.mxu0
        %v406 = vadd.f32 0.0, %v405
        %v407 = vpop.f32.mrf.mxu0
        %v408 = vadd.f32 0.0, %v407
        %v409 = vpop.f32.mrf.mxu0
        %v410 = vadd.f32 0.0, %v409
        %v411 = vpop.f32.mrf.mxu0
        %v412 = vadd.f32 0.0, %v411
        %413 = vdwg.mxu0
        %414 = vmatprep.subr.bf16.mxu0 0
        %415 = vmatpush1.bf16.msra.mxu0 0
        %416 = vmatprep.subr.bf16.mxu0 0
        %417 = vmatpush1.bf16.msra.mxu0 0
        %418 = vmatprep.subr.bf16.mxu0 0
        %419 = vmatpush1.bf16.msra.mxu0 0
        %420 = vmatprep.subr.bf16.mxu0 0
        %421 = vmatpush1.bf16.msra.mxu0 0
        %422 = vmatprep.subr.bf16.mxu0 0
        %423 = vmatpush1.bf16.msra.mxu0 0
        %424 = vmatprep.subr.bf16.mxu0 0
        %425 = vmatpush1.bf16.msra.mxu0 0
        %426 = vmatprep.subr.bf16.mxu0 0
        %427 = vmatpush1.bf16.msra.mxu0 0
        %428 = vmatprep.subr.bf16.mxu0 0
        %429 = vmatpush1.bf16.msra.mxu0 %v359
        %430 = vmatprep.subr.bf16.mxu0 0
        %431 = vmatpush2.bf16.msra.mxu0 0
        %432 = vmatprep.subr.bf16.mxu0 0
        %433 = vmatpush2.bf16.msra.mxu0 0
        %434 = vmatprep.subr.bf16.mxu0 0
        %435 = vmatpush2.bf16.msra.mxu0 0
        %436 = vmatprep.subr.bf16.mxu0 0
        %437 = vmatpush2.bf16.msra.mxu0 0
        %438 = vmatprep.subr.bf16.mxu0 0
        %439 = vmatpush2.bf16.msra.mxu0 0
        %440 = vmatprep.subr.bf16.mxu0 0
        %441 = vmatpush2.bf16.msra.mxu0 0
        %442 = vmatprep.subr.bf16.mxu0 0
        %443 = vmatpush2.bf16.msra.mxu0 0
        %444 = vmatprep.subr.bf16.mxu0 0
        %445 = vmatpush2.bf16.msra.mxu0 0
        %446 = vmatprep.mubr.bf16.mxu0 0
        %447 = vmatmul.mubr.bf16.gmra.mxu0 %v346
        %v448 = vpop.f32.mrf.mxu0
        %v449 = vadd.f32 0.0, %v448
        %v450 = vpop.f32.mrf.mxu0
        %v451 = vpop.f32.mrf.mxu0
        %v452 = vadd.f32 0.0, %v451
        %v453 = vpop.f32.mrf.mxu0
        %454 = vmatprep.mubr.bf16.mxu0 0
        %455 = vmatmul.mubr.bf16.gmra.mxu0 %v349
        %v456 = vpop.f32.mrf.mxu0
        %v457 = vadd.f32 0.0, %v456
        %v458 = vpop.f32.mrf.mxu0
        %v459 = vpop.f32.mrf.mxu0
        %v460 = vadd.f32 0.0, %v459
        %v461 = vpop.f32.mrf.mxu0
        %462 = vdwg.mxu0
        %v467 = vunpack.c.l.b16 %v312
        %v468 = vunpack.c.l.b16 %v313
        %v469 = vunpack.c.l.b16 %v314
        %v470 = vunpack.c.l.b16 %v315
        %v471 = vpack.c.b16 %v468, %v467
        %v472 = vpack.c.b16 %v470, %v469
        %v474 = vsel %vm344, %v471, 0
        %v477 = vsel %vm344, %v472, 0
        %v480 = vsel %vm351, %v303, 0
        %v483 = vsel %vm351, %v311, 0
        %v486 = vsel %vm351, %v310, 0
        %488 = vmatprep.subr.bf16.mxu0 0
        %489 = vmatpush1.bf16.msra.mxu0 0
        %490 = vmatprep.subr.bf16.mxu0 0
        %491 = vmatpush1.bf16.msra.mxu0 0
        %492 = vmatprep.subr.bf16.mxu0 0
        %493 = vmatpush1.bf16.msra.mxu0 0
        %494 = vmatprep.subr.bf16.mxu0 0
        %495 = vmatpush1.bf16.msra.mxu0 0
        %496 = vmatprep.subr.bf16.mxu0 0
        %497 = vmatpush1.bf16.msra.mxu0 0
        %498 = vmatprep.subr.bf16.mxu0 0
        %499 = vmatpush1.bf16.msra.mxu0 0
        %500 = vmatprep.subr.bf16.mxu0 0
        %501 = vmatpush1.bf16.msra.mxu0 0
        %502 = vmatprep.subr.bf16.mxu0 %v483
        %503 = vmatpush1.bf16.msra.mxu0 %v480
        %504 = vmatprep.subr.bf16.mxu0 0
        %505 = vmatpush2.bf16.msra.mxu0 0
        %506 = vmatprep.subr.bf16.mxu0 0
        %507 = vmatpush2.bf16.msra.mxu0 0
        %508 = vmatprep.subr.bf16.mxu0 0
        %509 = vmatpush2.bf16.msra.mxu0 0
        %510 = vmatprep.subr.bf16.mxu0 0
        %511 = vmatpush2.bf16.msra.mxu0 0
        %512 = vmatprep.subr.bf16.mxu0 0
        %513 = vmatpush2.bf16.msra.mxu0 0
        %514 = vmatprep.subr.bf16.mxu0 0
        %515 = vmatpush2.bf16.msra.mxu0 0
        %516 = vmatprep.subr.bf16.mxu0 0
        %517 = vmatpush2.bf16.msra.mxu0 0
        %518 = vmatprep.subr.bf16.mxu0 0
        %519 = vmatpush2.bf16.msra.mxu0 0
        %520 = vmatprep.mubr.bf16.mxu0 0
        %521 = vmatmul.mubr.bf16.gmra.mxu0 %v474
        %v522 = vpop.f32.mrf.mxu0
        %v523 = vadd.f32 %v396, %v522
        %v524 = vpop.f32.mrf.mxu0
        %v525 = vadd.f32 %v398, %v524
        %v526 = vpop.f32.mrf.mxu0
        %v527 = vadd.f32 %v400, %v526
        %v528 = vpop.f32.mrf.mxu0
        %v529 = vadd.f32 %v402, %v528
        %530 = vmatprep.mubr.bf16.mxu0 0
        %531 = vmatmul.mubr.bf16.gmra.mxu0 %v477
        %v532 = vpop.f32.mrf.mxu0
        %v533 = vadd.f32 %v406, %v532
        %v534 = vpop.f32.mrf.mxu0
        %v535 = vadd.f32 %v408, %v534
        %v536 = vpop.f32.mrf.mxu0
        %v537 = vadd.f32 %v410, %v536
        %v538 = vpop.f32.mrf.mxu0
        %v539 = vadd.f32 %v412, %v538
        %540 = vdwg.mxu0
        %541 = vmatprep.subr.bf16.mxu0 0
        %542 = vmatpush1.bf16.msra.mxu0 0
        %543 = vmatprep.subr.bf16.mxu0 0
        %544 = vmatpush1.bf16.msra.mxu0 0
        %545 = vmatprep.subr.bf16.mxu0 0
        %546 = vmatpush1.bf16.msra.mxu0 0
        %547 = vmatprep.subr.bf16.mxu0 0
        %548 = vmatpush1.bf16.msra.mxu0 0
        %549 = vmatprep.subr.bf16.mxu0 0
        %550 = vmatpush1.bf16.msra.mxu0 0
        %551 = vmatprep.subr.bf16.mxu0 0
        %552 = vmatpush1.bf16.msra.mxu0 0
        %553 = vmatprep.subr.bf16.mxu0 0
        %554 = vmatpush1.bf16.msra.mxu0 0
        %555 = vmatprep.subr.bf16.mxu0 0
        %556 = vmatpush1.bf16.msra.mxu0 %v486
        %557 = vmatprep.subr.bf16.mxu0 0
        %558 = vmatpush2.bf16.msra.mxu0 0
        %559 = vmatprep.subr.bf16.mxu0 0
        %560 = vmatpush2.bf16.msra.mxu0 0
        %561 = vmatprep.subr.bf16.mxu0 0
        %562 = vmatpush2.bf16.msra.mxu0 0
        %563 = vmatprep.subr.bf16.mxu0 0
        %564 = vmatpush2.bf16.msra.mxu0 0
        %565 = vmatprep.subr.bf16.mxu0 0
        %566 = vmatpush2.bf16.msra.mxu0 0
        %567 = vmatprep.subr.bf16.mxu0 0
        %568 = vmatpush2.bf16.msra.mxu0 0
        %569 = vmatprep.subr.bf16.mxu0 0
        %570 = vmatpush2.bf16.msra.mxu0 0
        %571 = vmatprep.subr.bf16.mxu0 0
        %572 = vmatpush2.bf16.msra.mxu0 0
        %573 = vmatprep.mubr.bf16.mxu0 0
        %574 = vmatmul.mubr.bf16.gmra.mxu0 %v474
        %v575 = vpop.f32.mrf.mxu0
        %v576 = vadd.f32 %v449, %v575
        %v577 = vpop.f32.mrf.mxu0
        %v578 = vpop.f32.mrf.mxu0
        %v579 = vadd.f32 %v452, %v578
        %v580 = vpop.f32.mrf.mxu0
        %581 = vmatprep.mubr.bf16.mxu0 0
        %582 = vmatmul.mubr.bf16.gmra.mxu0 %v477
        %v583 = vpop.f32.mrf.mxu0
        %v584 = vadd.f32 %v457, %v583
        %v585 = vpop.f32.mrf.mxu0
        %v586 = vpop.f32.mrf.mxu0
        %v587 = vadd.f32 %v460, %v586
        %v588 = vpop.f32.mrf.mxu0
        %589 = vdwg.mxu0
        %s590 = scalar_lea.vmem %s0, 32
        %v591 = vld [vmem:[%s590] sm:$0xf]
        %v592 = vld [vmem:[%s590 + $0x4] sm:$0xf]
        %v593 = vld [vmem:[%s590 + $0x8] sm:$0xf]
        %v594 = vld [vmem:[%s590 + $0xc] sm:$0xf]
        %v599 = vunpack.c.l.b16 %v591
        %v600 = vunpack.c.l.b16 %v592
        %v601 = vunpack.c.l.b16 %v593
        %v602 = vunpack.c.l.b16 %v594
        %v603 = vpack.c.b16 %v600, %v599
        %v604 = vpack.c.b16 %v602, %v601
        %605 = vrot.lane.b32.xlu0 %v303, 110
        %v606 = vpop.permute.xlu0 %605
        %607 = vrot.lane.b32.xlu0 %v311, 110
        %v608 = vpop.permute.xlu0 %607
        %609 = vrot.lane.b32.xlu0 %v310, 110
        %v610 = vpop.permute.xlu0 %609
        %611 = vrot.lane.b32.xlu0 %v294, 110
        %v612 = vpop.permute.xlu0 %611
        %vm613 = vcmask 900096
        %v614 = vsel %vm613, %v606, %v608
        %v615 = vsel %vm613, %v608, %v610
        %v616 = vsel %vm613, %v610, %v612
        %v618 = vsel %vm344, %v603, 0
        %v621 = vsel %vm344, %v604, 0
        %v624 = vsel %vm351, %v614, 0
        %v627 = vsel %vm351, %v615, 0
        %v630 = vsel %vm351, %v616, 0
        %632 = vmatprep.subr.bf16.mxu0 0
        %633 = vmatpush1.bf16.msra.mxu0 0
        %634 = vmatprep.subr.bf16.mxu0 0
        %635 = vmatpush1.bf16.msra.mxu0 0
        %636 = vmatprep.subr.bf16.mxu0 0
        %637 = vmatpush1.bf16.msra.mxu0 0
        %638 = vmatprep.subr.bf16.mxu0 0
        %639 = vmatpush1.bf16.msra.mxu0 0
        %640 = vmatprep.subr.bf16.mxu0 0
        %641 = vmatpush1.bf16.msra.mxu0 0
        %642 = vmatprep.subr.bf16.mxu0 0
        %643 = vmatpush1.bf16.msra.mxu0 0
        %644 = vmatprep.subr.bf16.mxu0 0
        %645 = vmatpush1.bf16.msra.mxu0 0
        %646 = vmatprep.subr.bf16.mxu0 %v627
        %647 = vmatpush1.bf16.msra.mxu0 %v624
        %648 = vmatprep.subr.bf16.mxu0 0
        %649 = vmatpush2.bf16.msra.mxu0 0
        %650 = vmatprep.subr.bf16.mxu0 0
        %651 = vmatpush2.bf16.msra.mxu0 0
        %652 = vmatprep.subr.bf16.mxu0 0
        %653 = vmatpush2.bf16.msra.mxu0 0
        %654 = vmatprep.subr.bf16.mxu0 0
        %655 = vmatpush2.bf16.msra.mxu0 0
        %656 = vmatprep.subr.bf16.mxu0 0
        %657 = vmatpush2.bf16.msra.mxu0 0
        %658 = vmatprep.subr.bf16.mxu0 0
        %659 = vmatpush2.bf16.msra.mxu0 0
        %660 = vmatprep.subr.bf16.mxu0 0
        %661 = vmatpush2.bf16.msra.mxu0 0
        %662 = vmatprep.subr.bf16.mxu0 0
        %663 = vmatpush2.bf16.msra.mxu0 0
        %664 = vmatprep.mubr.bf16.mxu0 0
        %665 = vmatmul.mubr.bf16.gmra.mxu0 %v618
        %v666 = vpop.f32.mrf.mxu0
        %v667 = vadd.f32 0.0, %v666
        %v668 = vpop.f32.mrf.mxu0
        %v669 = vadd.f32 0.0, %v668
        %v670 = vpop.f32.mrf.mxu0
        %v671 = vadd.f32 0.0, %v670
        %v672 = vpop.f32.mrf.mxu0
        %v673 = vadd.f32 0.0, %v672
        %674 = vmatprep.mubr.bf16.mxu0 0
        %675 = vmatmul.mubr.bf16.gmra.mxu0 %v621
        %v676 = vpop.f32.mrf.mxu0
        %v677 = vadd.f32 0.0, %v676
        %v678 = vpop.f32.mrf.mxu0
        %v679 = vadd.f32 0.0, %v678
        %v680 = vpop.f32.mrf.mxu0
        %v681 = vadd.f32 0.0, %v680
        %v682 = vpop.f32.mrf.mxu0
        %v683 = vadd.f32 0.0, %v682
        %684 = vdwg.mxu0
        %685 = vmatprep.subr.bf16.mxu0 0
        %686 = vmatpush1.bf16.msra.mxu0 0
        %687 = vmatprep.subr.bf16.mxu0 0
        %688 = vmatpush1.bf16.msra.mxu0 0
        %689 = vmatprep.subr.bf16.mxu0 0
        %690 = vmatpush1.bf16.msra.mxu0 0
        %691 = vmatprep.subr.bf16.mxu0 0
        %692 = vmatpush1.bf16.msra.mxu0 0
        %693 = vmatprep.subr.bf16.mxu0 0
        %694 = vmatpush1.bf16.msra.mxu0 0
        %695 = vmatprep.subr.bf16.mxu0 0
        %696 = vmatpush1.bf16.msra.mxu0 0
        %697 = vmatprep.subr.bf16.mxu0 0
        %698 = vmatpush1.bf16.msra.mxu0 0
        %699 = vmatprep.subr.bf16.mxu0 0
        %700 = vmatpush1.bf16.msra.mxu0 %v630
        %701 = vmatprep.subr.bf16.mxu0 0
        %702 = vmatpush2.bf16.msra.mxu0 0
        %703 = vmatprep.subr.bf16.mxu0 0
        %704 = vmatpush2.bf16.msra.mxu0 0
        %705 = vmatprep.subr.bf16.mxu0 0
        %706 = vmatpush2.bf16.msra.mxu0 0
        %707 = vmatprep.subr.bf16.mxu0 0
        %708 = vmatpush2.bf16.msra.mxu0 0
        %709 = vmatprep.subr.bf16.mxu0 0
        %710 = vmatpush2.bf16.msra.mxu0 0
        %711 = vmatprep.subr.bf16.mxu0 0
        %712 = vmatpush2.bf16.msra.mxu0 0
        %713 = vmatprep.subr.bf16.mxu0 0
        %714 = vmatpush2.bf16.msra.mxu0 0
        %715 = vmatprep.subr.bf16.mxu0 0
        %716 = vmatpush2.bf16.msra.mxu0 0
        %717 = vmatprep.mubr.bf16.mxu0 0
        %718 = vmatmul.mubr.bf16.gmra.mxu0 %v618
        %v719 = vpop.f32.mrf.mxu0
        %v720 = vadd.f32 0.0, %v719
        %v721 = vpop.f32.mrf.mxu0
        %v722 = vpop.f32.mrf.mxu0
        %v723 = vadd.f32 0.0, %v722
        %v724 = vpop.f32.mrf.mxu0
        %725 = vmatprep.mubr.bf16.mxu0 0
        %726 = vmatmul.mubr.bf16.gmra.mxu0 %v621
        %v727 = vpop.f32.mrf.mxu0
        %v728 = vadd.f32 0.0, %v727
        %v729 = vpop.f32.mrf.mxu0
        %v730 = vpop.f32.mrf.mxu0
        %v731 = vadd.f32 0.0, %v730
        %v732 = vpop.f32.mrf.mxu0
        %733 = vdwg.mxu0
        %v734 = vadd.f32 %v523, %v667
        %v735 = vadd.f32 %v525, %v669
        %v736 = vadd.f32 %v576, %v720
        %v737 = vadd.f32 %v527, %v671
        %v738 = vadd.f32 %v529, %v673
        %v739 = vadd.f32 %v579, %v723
        %v740 = vadd.f32 %v533, %v677
        %v741 = vadd.f32 %v535, %v679
        %v742 = vadd.f32 %v584, %v728
        %v743 = vadd.f32 %v537, %v681
        %v744 = vadd.f32 %v539, %v683
        %v745 = vadd.f32 %v587, %v731
        %s746 = scalar_lea.vmem %s0, 48
        %v747 = vld [vmem:[%s746] sm:$0xf]
        %v748 = vld [vmem:[%s746 + $0x4] sm:$0xf]
        %v749 = vld [vmem:[%s746 + $0x8] sm:$0xf]
        %v750 = vld [vmem:[%s746 + $0xc] sm:$0xf]
        %v755 = vunpack.c.l.b16 %v747
        %v756 = vunpack.c.l.b16 %v748
        %v757 = vunpack.c.l.b16 %v749
        %v758 = vunpack.c.l.b16 %v750
        %v759 = vpack.c.b16 %v756, %v755
        %v760 = vpack.c.b16 %v758, %v757
        %761 = vrot.lane.b32.xlu0 %v303, 109
        %v762 = vpop.permute.xlu0 %761
        %763 = vrot.lane.b32.xlu0 %v311, 109
        %v764 = vpop.permute.xlu0 %763
        %765 = vrot.lane.b32.xlu0 %v310, 109
        %v766 = vpop.permute.xlu0 %765
        %767 = vrot.lane.b32.xlu0 %v294, 109
        %v768 = vpop.permute.xlu0 %767
        %vm769 = vcmask 891904
        %v770 = vsel %vm769, %v762, %v764
        %v771 = vsel %vm769, %v764, %v766
        %v772 = vsel %vm769, %v766, %v768
        %v774 = vsel %vm344, %v759, 0
        %v777 = vsel %vm344, %v760, 0
        %v780 = vsel %vm351, %v770, 0
        %v783 = vsel %vm351, %v771, 0
        %v786 = vsel %vm351, %v772, 0
        %788 = vmatprep.subr.bf16.mxu0 0
        %789 = vmatpush1.bf16.msra.mxu0 0
        %790 = vmatprep.subr.bf16.mxu0 0
        %791 = vmatpush1.bf16.msra.mxu0 0
        %792 = vmatprep.subr.bf16.mxu0 0
        %793 = vmatpush1.bf16.msra.mxu0 0
        %794 = vmatprep.subr.bf16.mxu0 0
        %795 = vmatpush1.bf16.msra.mxu0 0
        %796 = vmatprep.subr.bf16.mxu0 0
        %797 = vmatpush1.bf16.msra.mxu0 0
        %798 = vmatprep.subr.bf16.mxu0 0
        %799 = vmatpush1.bf16.msra.mxu0 0
        %800 = vmatprep.subr.bf16.mxu0 0
        %801 = vmatpush1.bf16.msra.mxu0 0
        %802 = vmatprep.subr.bf16.mxu0 %v783
        %803 = vmatpush1.bf16.msra.mxu0 %v780
        %804 = vmatprep.subr.bf16.mxu0 0
        %805 = vmatpush2.bf16.msra.mxu0 0
        %806 = vmatprep.subr.bf16.mxu0 0
        %807 = vmatpush2.bf16.msra.mxu0 0
        %808 = vmatprep.subr.bf16.mxu0 0
        %809 = vmatpush2.bf16.msra.mxu0 0
        %810 = vmatprep.subr.bf16.mxu0 0
        %811 = vmatpush2.bf16.msra.mxu0 0
        %812 = vmatprep.subr.bf16.mxu0 0
        %813 = vmatpush2.bf16.msra.mxu0 0
        %814 = vmatprep.subr.bf16.mxu0 0
        %815 = vmatpush2.bf16.msra.mxu0 0
        %816 = vmatprep.subr.bf16.mxu0 0
        %817 = vmatpush2.bf16.msra.mxu0 0
        %818 = vmatprep.subr.bf16.mxu0 0
        %819 = vmatpush2.bf16.msra.mxu0 0
        %820 = vmatprep.mubr.bf16.mxu0 0
        %821 = vmatmul.mubr.bf16.gmra.mxu0 %v774
        %v822 = vpop.f32.mrf.mxu0
        %v823 = vadd.f32 0.0, %v822
        %v824 = vpop.f32.mrf.mxu0
        %v825 = vadd.f32 0.0, %v824
        %v826 = vpop.f32.mrf.mxu0
        %v827 = vadd.f32 0.0, %v826
        %v828 = vpop.f32.mrf.mxu0
        %v829 = vadd.f32 0.0, %v828
        %830 = vmatprep.mubr.bf16.mxu0 0
        %831 = vmatmul.mubr.bf16.gmra.mxu0 %v777
        %v832 = vpop.f32.mrf.mxu0
        %v833 = vadd.f32 0.0, %v832
        %v834 = vpop.f32.mrf.mxu0
        %v835 = vadd.f32 0.0, %v834
        %v836 = vpop.f32.mrf.mxu0
        %v837 = vadd.f32 0.0, %v836
        %v838 = vpop.f32.mrf.mxu0
        %v839 = vadd.f32 0.0, %v838
        %840 = vdwg.mxu0
        %841 = vmatprep.subr.bf16.mxu0 0
        %842 = vmatpush1.bf16.msra.mxu0 0
        %843 = vmatprep.subr.bf16.mxu0 0
        %844 = vmatpush1.bf16.msra.mxu0 0
        %845 = vmatprep.subr.bf16.mxu0 0
        %846 = vmatpush1.bf16.msra.mxu0 0
        %847 = vmatprep.subr.bf16.mxu0 0
        %848 = vmatpush1.bf16.msra.mxu0 0
        %849 = vmatprep.subr.bf16.mxu0 0
        %850 = vmatpush1.bf16.msra.mxu0 0
        %851 = vmatprep.subr.bf16.mxu0 0
        %852 = vmatpush1.bf16.msra.mxu0 0
        %853 = vmatprep.subr.bf16.mxu0 0
        %854 = vmatpush1.bf16.msra.mxu0 0
        %855 = vmatprep.subr.bf16.mxu0 0
        %856 = vmatpush1.bf16.msra.mxu0 %v786
        %857 = vmatprep.subr.bf16.mxu0 0
        %858 = vmatpush2.bf16.msra.mxu0 0
        %859 = vmatprep.subr.bf16.mxu0 0
        %860 = vmatpush2.bf16.msra.mxu0 0
        %861 = vmatprep.subr.bf16.mxu0 0
        %862 = vmatpush2.bf16.msra.mxu0 0
        %863 = vmatprep.subr.bf16.mxu0 0
        %864 = vmatpush2.bf16.msra.mxu0 0
        %865 = vmatprep.subr.bf16.mxu0 0
        %866 = vmatpush2.bf16.msra.mxu0 0
        %867 = vmatprep.subr.bf16.mxu0 0
        %868 = vmatpush2.bf16.msra.mxu0 0
        %869 = vmatprep.subr.bf16.mxu0 0
        %870 = vmatpush2.bf16.msra.mxu0 0
        %871 = vmatprep.subr.bf16.mxu0 0
        %872 = vmatpush2.bf16.msra.mxu0 0
        %873 = vmatprep.mubr.bf16.mxu0 0
        %874 = vmatmul.mubr.bf16.gmra.mxu0 %v774
        %v875 = vpop.f32.mrf.mxu0
        %v876 = vadd.f32 0.0, %v875
        %v877 = vpop.f32.mrf.mxu0
        %v878 = vpop.f32.mrf.mxu0
        %v879 = vadd.f32 0.0, %v878
        %v880 = vpop.f32.mrf.mxu0
        %881 = vmatprep.mubr.bf16.mxu0 0
        %882 = vmatmul.mubr.bf16.gmra.mxu0 %v777
        %v883 = vpop.f32.mrf.mxu0
        %v884 = vadd.f32 0.0, %v883
        %v885 = vpop.f32.mrf.mxu0
        %v886 = vpop.f32.mrf.mxu0
        %v887 = vadd.f32 0.0, %v886
        %v888 = vpop.f32.mrf.mxu0
        %889 = vdwg.mxu0
        %v890 = vadd.f32 %v734, %v823
        %v891 = vadd.f32 %v735, %v825
        %v892 = vadd.f32 %v736, %v876
        %v893 = vadd.f32 %v737, %v827
        %v894 = vadd.f32 %v738, %v829
        %v895 = vadd.f32 %v739, %v879
        %v896 = vadd.f32 %v740, %v833
        %v897 = vadd.f32 %v741, %v835
        %v898 = vadd.f32 %v742, %v884
        %v899 = vadd.f32 %v743, %v837
        %v900 = vadd.f32 %v744, %v839
        %v901 = vadd.f32 %v745, %v887
        %v902 = vld [vmem:[%s1] sm:$0xff]
        %v903 = vld [vmem:[%s1 + $0x8] sm:$0xff]
        %v904 = vld [vmem:[%s1 + $0x10] sm:$0xff]
        %v905 = vld [vmem:[%s1 + $0x18] sm:$0xff]
        %907 = vset.pattern.permute.xlu0 0
        %908 = vperm.xlu0 %907, %v902
        %v909 = vpop.permute.xlu0 %908
        %912 = vset.pattern.permute.xlu0 0
        %913 = vperm.xlu0 %912, %v903
        %v914 = vpop.permute.xlu0 %913
        %917 = vset.pattern.permute.xlu0 0
        %918 = vperm.xlu0 %917, %v904
        %v919 = vpop.permute.xlu0 %918
        %922 = vset.pattern.permute.xlu0 0
        %923 = vperm.xlu0 %922, %v905
        %v924 = vpop.permute.xlu0 %923
        %v926 = vadd.f32 %v890, %v909
        %v927 = vadd.f32 %v891, %v909
        %v928 = vadd.f32 %v892, %v909
        %v929 = vadd.f32 %v893, %v914
        %v930 = vadd.f32 %v894, %v914
        %v931 = vadd.f32 %v895, %v914
        %v932 = vadd.f32 %v896, %v919
        %v933 = vadd.f32 %v897, %v919
        %v934 = vadd.f32 %v898, %v919
        %v935 = vadd.f32 %v899, %v924
        %v936 = vadd.f32 %v900, %v924
        %v937 = vadd.f32 %v901, %v924
        %v938 = vmax.f32 %v926, 0.0
        %v939 = vmax.f32 %v927, 0.0
        %v940 = vmax.f32 %v928, 0.0
        %v941 = vmax.f32 %v929, 0.0
        %v942 = vmax.f32 %v930, 0.0
        %v943 = vmax.f32 %v931, 0.0
        %v944 = vmax.f32 %v932, 0.0
        %v945 = vmax.f32 %v933, 0.0
        %v946 = vmax.f32 %v934, 0.0
        %v947 = vmax.f32 %v935, 0.0
        %v948 = vmax.f32 %v936, 0.0
        %v949 = vmax.f32 %v937, 0.0
        %950 = vst [vmem:[%s260] sm:$0xff] %v938
        %951 = vst [vmem:[%s260 + $0x8] sm:$0xff] %v939
        %952 = vst [vmem:[%s260 + $0x10] sm:$0xff] %v940
        %953 = vst [vmem:[%s260 + $0x18] sm:$0xff] %v941
        %954 = vst [vmem:[%s260 + $0x20] sm:$0xff] %v942
        %955 = vst [vmem:[%s260 + $0x28] sm:$0xff] %v943
        %956 = vst [vmem:[%s260 + $0x30] sm:$0xff] %v944
        %957 = vst [vmem:[%s260 + $0x38] sm:$0xff] %v945
        %958 = vst [vmem:[%s260 + $0x40] sm:$0xff] %v946
        %959 = vst [vmem:[%s260 + $0x48] sm:$0xff] %v947
        %960 = vst [vmem:[%s260 + $0x50] sm:$0xff] %v948
        %961 = vst [vmem:[%s260 + $0x58] sm:$0xff] %v949
        %s962 = sand.u32 %s142, 1
        %s963 = scalar_lea.sflag [#allocation3], %s962
        %s964 = sand.u32 %s142, 1
        %s965 = smul.addr %s964, 96
        %s966 = scalar_lea.vmem [#allocation2], %s965
        // Predicated region
        $region37: #{tpu_custom_call.1} parent=35 // pred_check
          %p967 = pneg %p152
        $region38: #{tpu_custom_call.1} parent=35 // pred_check_branch
          %969 = sbr.rel (%p967) target = $region40
        $region39: #{tpu_custom_call.1} parent=35 // pred_region
          %s970 = smul.u32 3, %s23
          %s972 = ssub.s32 1536, 1536
          %973 = vsyncadd %s963, %s972
          %s974 = smul.addr %s22, 12
          %s975 = sadd.s32 %s970, %s974
          %s976 = smul.addr %s975, 128
          %s977 = scalar_lea.hbm %s4, %s976
          %s978 = sshll.u32 %s966, 4
          %s979 = int_to_ptr.vmem [resolvable:$true] %s978
          %984 = dma.vmem_to_hbm [thread:$0]  %s979, 1536, %s977, %s963, 384, 384, 24
        $region40: #{tpu_custom_call.1} parent=35 // pred_fallthru
          _
      $region36: #{tpu_custom_call.1} parent=5 // pred_fallthru
        _
      %p985 = scmp.le.s32.totalorder 2, %s13
      // Predicated region
      $region41: #{tpu_custom_call.1} parent=5 // pred_check
        %p986 = pneg %p985
      $region42: #{tpu_custom_call.1} parent=5 // pred_check_branch
        %988 = sbr.rel (%p986) target = $region44
      $region43: #{tpu_custom_call.1} parent=5 // pred_region
        %s989 = ssub.s32 %s13, 2
        // Predicated region
        $region45: #{tpu_custom_call.1} parent=43 // pred_check
          %p990 = pneg %p158
        $region46: #{tpu_custom_call.1} parent=43 // pred_check_branch
          %992 = sbr.rel (%p990) target = $region48
        $region47: #{tpu_custom_call.1} parent=43 // pred_region
          %s993 = sand.u32 %s143, 1
          %s994 = scalar_lea.sflag [#allocation3], %s993
          %s995 = sand.u32 %s143, 1
          %s996 = smul.addr %s995, 96
          %s997 = scalar_lea.vmem [#allocation2], %s996
          %998 = dma.done %s994, 1536
        $region48: #{tpu_custom_call.1} parent=43 // pred_fallthru
          _
      $region44: #{tpu_custom_call.1} parent=5 // pred_fallthru
        _
    $region6: #{tpu_custom_call.1} parent=1 // loop_footer
      %s17 = sadd.s32 1, %s13
    $region7: #{tpu_custom_call.1} parent=1 // loop_footer_branch
      %12 = sbr.rel target = $region3
    $region8: #{tpu_custom_call.1} parent=1 // loop_exit
      _
    %999 = vsyncpa [#allocation3], 1
    %s1000 = scalar_lea.sflag [#allocation3], 1
    %1001 = vsyncpa %s1000, 1

</llo_original>
